<compile_context>
chip_gen: v6e
topology: v6e:2x2x1
jax: 0.10.0
libtpu: 0.0.40
codegen_flags: <defaults>
</compile_context>

<pallas_src>
import functools

import numpy as np
import jax
import jax.numpy as jnp
from jax.experimental import pallas as pl
from jax.experimental.pallas import tpu as pltpu

_VMEM = pltpu.MemorySpace.VMEM
_SMEM = pltpu.MemorySpace.SMEM


# ---------------------------------------------------------------------------
# Diffusion schedule buffers (mirrors GaussianDiffusionBlock.__init__).
# Computed on host in float64 (like torch.linspace(..., dtype=float64) + cumprod)
# and then cast to float32, matching register_buffer(...).to(torch.float32).
# ---------------------------------------------------------------------------
def make_schedule_buffers(timesteps: int = 1000):
    scale = 1000.0 / timesteps
    beta_start = scale * 0.0001
    beta_end = scale * 0.02
    betas = np.linspace(beta_start, beta_end, timesteps, dtype=np.float64)
    alphas = 1.0 - betas
    alphas_cumprod = np.cumprod(alphas, axis=0)
    alphas_cumprod_prev = np.concatenate(
        [np.ones((1,), np.float64), alphas_cumprod[:-1]])
    posterior_variance = (betas * (1.0 - alphas_cumprod_prev)
                          / (1.0 - alphas_cumprod))
    buf = {
        'sqrt_recip_alphas_cumprod': np.sqrt(1.0 / alphas_cumprod),
        'sqrt_recipm1_alphas_cumprod': np.sqrt(1.0 / alphas_cumprod - 1.0),
        'posterior_mean_coef1': (betas * np.sqrt(alphas_cumprod_prev)
                                 / (1.0 - alphas_cumprod)),
        'posterior_mean_coef2': ((1.0 - alphas_cumprod_prev) * np.sqrt(alphas)
                                 / (1.0 - alphas_cumprod)),
        'posterior_log_variance_clipped':
            np.log(np.clip(posterior_variance, 1e-20, None)),
    }
    return {k: jnp.asarray(v, dtype=jnp.float32) for k, v in buf.items()}


# ---------------------------------------------------------------------------
# Fused forward()/p_sample() kernel — purely elementwise on a (B, C, H*W) slab.
#   coef_ref (SMEM, f32[5]) = [ sqrt(1/ac[t]), sqrt(1/ac[t]-1),
#                               posterior_mean_coef1[t], posterior_mean_coef2[t],
#                               exp(0.5*log_var[t]) if t>0 else 0 ]
# ---------------------------------------------------------------------------
def _p_sample_kernel(img_ref, eps_ref, noise_ref, coef_ref, pred_ref, x0_ref):
    x = 2.0 * img_ref[...] - 1.0                 # normalize_to_neg_one_to_one
    eps = eps_ref[...]

    sqrt_recip_ac = coef_ref[0]
    sqrt_recipm1_ac = coef_ref[1]
    mean_c1 = coef_ref[2]
    mean_c2 = coef_ref[3]
    noise_scale = coef_ref[4]

    # predict_start_from_noise + clamp(-1, 1)  (clip_denoised=True)
    x0 = sqrt_recip_ac * x - sqrt_recipm1_ac * eps
    x0 = jnp.clip(x0, -1.0, 1.0)

    # q_posterior mean + noise injection
    mean = mean_c1 * x0 + mean_c2 * x
    pred_ref[...] = (mean + noise_scale * noise_ref[...]).astype(pred_ref.dtype)
    x0_ref[...] = x0.astype(x0_ref.dtype)


def p_sample_step(img3d, eps3d, noise3d, coefs):
    shape = jax.ShapeDtypeStruct(img3d.shape, jnp.float32)
    return pl.pallas_call(
        _p_sample_kernel,
        in_specs=[pl.BlockSpec(memory_space=_VMEM),
                  pl.BlockSpec(memory_space=_VMEM),
                  pl.BlockSpec(memory_space=_VMEM),
                  pl.BlockSpec(memory_space=_SMEM)],
        out_specs=(pl.BlockSpec(memory_space=_VMEM),
                   pl.BlockSpec(memory_space=_VMEM)),
        out_shape=(shape, shape),
    )(img3d, eps3d, noise3d, coefs)


# ---------------------------------------------------------------------------
# Stand-in denoiser: eps = tanh( W (1x1 conv over channels) @ normalize(img)
#                                + bias + time_embedding[t] )
# TODO(synk): the real `self.model(x, t)` (UNet) is not defined in the spec.
# ---------------------------------------------------------------------------
def _standin_model_kernel(img_ref, w_ref, bt_ref, eps_ref):
    x = 2.0 * img_ref[...] - 1.0                 # the model sees the normalized image
    B = img_ref.shape[0]
    for b in range(B):                           # static unroll over tiny batch
        y = jnp.dot(w_ref[...], x[b], preferred_element_type=jnp.float32)
        eps_ref[b] = jnp.tanh(y + bt_ref[...]).astype(eps_ref.dtype)


def standin_denoiser(img3d, w, bias_plus_temb):
    B, C, P = img3d.shape
    return pl.pallas_call(
        _standin_model_kernel,
        in_specs=[pl.BlockSpec(memory_space=_VMEM),
                  pl.BlockSpec(memory_space=_VMEM),
                  pl.BlockSpec(memory_space=_VMEM)],
        out_specs=pl.BlockSpec(memory_space=_VMEM),
        out_shape=jax.ShapeDtypeStruct((B, C, P), jnp.float32),
    )(img3d, w, bias_plus_temb)


# ---------------------------------------------------------------------------
# Forward wrapper == GaussianDiffusionBlock.forward(img, t) -> (pred_img, x_start)
# ---------------------------------------------------------------------------
def gaussian_diffusion_forward(img, t, key, params, buffers, image_size):
    B, C, H, W = img.shape
    assert H == image_size and W == image_size, \
        f'height and width of image must be {image_size}'

    t = jnp.asarray(t, jnp.int32)
    img3d = img.reshape(B, C, H * W).astype(jnp.float32)   # lane-dense slab (no copy)

    # --- external denoiser: eps = model(normalize(img), t) -------------------
    temb = params['temb_table'][t]                          # (C,)
    bt = (params['bias'] + temb).reshape(C, 1)
    eps3d = standin_denoiser(img3d, params['w'], bt)

    # --- per-timestep scalar coefficients (SMEM operand) ---------------------
    log_var_t = buffers['posterior_log_variance_clipped'][t]
    noise_scale = jnp.where(t > 0, jnp.exp(0.5 * log_var_t), 0.0)
    coefs = jnp.stack([
        buffers['sqrt_recip_alphas_cumprod'][t],
        buffers['sqrt_recipm1_alphas_cumprod'][t],
        buffers['posterior_mean_coef1'][t],
        buffers['posterior_mean_coef2'][t],
        noise_scale,
    ]).astype(jnp.float32)

    noise3d = jax.random.normal(key, img3d.shape, dtype=jnp.float32)

    # --- fused normalize + p_sample math --------------------------------------
    pred3d, x03d = p_sample_step(img3d, eps3d, noise3d, coefs)
    return pred3d.reshape(B, C, H, W), x03d.reshape(B, C, H, W)


def init_standin_params(key, channels, timesteps):
    kw, kb, kt = jax.random.split(key, 3)
    return {
        'w': (0.3 * jax.random.normal(kw, (channels, channels))).astype(jnp.float32),
        'bias': (0.1 * jax.random.normal(kb, (channels,))).astype(jnp.float32),
        'temb_table': (0.1 * jax.random.normal(kt, (timesteps, channels))
                       ).astype(jnp.float32),
    }


if __name__ == "__main__":
    key = jax.random.PRNGKey(0)
    k_params, k_img, k_noise = jax.random.split(key, 3)

    B, C, IMG_SIZE = 2, 4, 16
    TIMESTEPS = 1000

    buffers = make_schedule_buffers(TIMESTEPS)
    params = init_standin_params(k_params, C, TIMESTEPS)

    # img in [0, 1] (the block normalizes it to [-1, 1] internally), t = 500
    img = jax.random.uniform(k_img, (B, C, IMG_SIZE, IMG_SIZE), dtype=jnp.float32)
    t = jnp.int32(500)

    fwd = jax.jit(functools.partial(gaussian_diffusion_forward, image_size=IMG_SIZE))
    pred_img, x_start = fwd(img, t, k_noise, params, buffers)
    pred_img, x_start = jax.block_until_ready((pred_img, x_start))

    assert pred_img.shape == (B, C, IMG_SIZE, IMG_SIZE), pred_img.shape
    assert x_start.shape == (B, C, IMG_SIZE, IMG_SIZE), x_start.shape
    assert bool(jnp.all(jnp.isfinite(pred_img)))
    assert bool(jnp.all(jnp.isfinite(x_start)))
    assert bool(jnp.all(jnp.abs(x_start) <= 1.0 + 1e-6))   # clip_denoised=True
    print("KERNEL_OK")
</pallas_src>

<mosaic_0001>
module attributes {stable_mosaic.version = 11 : i64} {
  func.func @_p_sample_kernel(%arg0: memref<2x4x256xf32, #tpu.memory_space<vmem>>, %arg1: memref<2x4x256xf32, #tpu.memory_space<vmem>>, %arg2: memref<2x4x256xf32, #tpu.memory_space<vmem>>, %arg3: memref<5xf32, #tpu.memory_space<smem>>, %arg4: memref<2x4x256xf32, #tpu.memory_space<vmem>>, %arg5: memref<2x4x256xf32, #tpu.memory_space<vmem>>) attributes {dimension_semantics = [], scalar_prefetch = 0 : i64, scratch_operands = 0 : i64, tpu.core_type = #tpu.core_type<tc>} {
    %c0 = arith.constant 0 : index
    %c0_0 = arith.constant 0 : index
    %c0_1 = arith.constant 0 : index
    %0 = vector.load %arg0[%c0, %c0_0, %c0_1] : memref<2x4x256xf32, #tpu.memory_space<vmem>>, vector<2x4x256xf32>
    %cst = arith.constant 2.000000e+00 : f32
    %1 = vector.broadcast %cst : f32 to vector<2x4x256xf32>
    %2 = arith.mulf %1, %0 : vector<2x4x256xf32>
    %cst_2 = arith.constant 1.000000e+00 : f32
    %3 = vector.broadcast %cst_2 : f32 to vector<2x4x256xf32>
    %4 = arith.subf %2, %3 : vector<2x4x256xf32>
    %c0_3 = arith.constant 0 : index
    %c0_4 = arith.constant 0 : index
    %c0_5 = arith.constant 0 : index
    %5 = vector.load %arg1[%c0_3, %c0_4, %c0_5] : memref<2x4x256xf32, #tpu.memory_space<vmem>>, vector<2x4x256xf32>
    %c0_6 = arith.constant 0 : index
    %6 = memref.load %arg3[%c0_6] : memref<5xf32, #tpu.memory_space<smem>>
    %c1 = arith.constant 1 : index
    %7 = memref.load %arg3[%c1] : memref<5xf32, #tpu.memory_space<smem>>
    %c2 = arith.constant 2 : index
    %8 = memref.load %arg3[%c2] : memref<5xf32, #tpu.memory_space<smem>>
    %c3 = arith.constant 3 : index
    %9 = memref.load %arg3[%c3] : memref<5xf32, #tpu.memory_space<smem>>
    %c4 = arith.constant 4 : index
    %10 = memref.load %arg3[%c4] : memref<5xf32, #tpu.memory_space<smem>>
    %11 = vector.broadcast %6 : f32 to vector<2x4x256xf32>
    %12 = arith.mulf %11, %4 : vector<2x4x256xf32>
    %13 = vector.broadcast %7 : f32 to vector<2x4x256xf32>
    %14 = arith.mulf %13, %5 : vector<2x4x256xf32>
    %15 = arith.subf %12, %14 : vector<2x4x256xf32>
    %cst_7 = arith.constant -1.000000e+00 : f32
    %cst_8 = arith.constant 1.000000e+00 : f32
    %16 = vector.broadcast %cst_7 : f32 to vector<2x4x256xf32>
    %17 = arith.maximumf %16, %15 : vector<2x4x256xf32>
    %18 = vector.broadcast %cst_8 : f32 to vector<2x4x256xf32>
    %19 = arith.minimumf %18, %17 : vector<2x4x256xf32>
    %20 = vector.broadcast %8 : f32 to vector<2x4x256xf32>
    %21 = arith.mulf %20, %19 : vector<2x4x256xf32>
    %22 = vector.broadcast %9 : f32 to vector<2x4x256xf32>
    %23 = arith.mulf %22, %4 : vector<2x4x256xf32>
    %24 = arith.addf %21, %23 : vector<2x4x256xf32>
    %c0_9 = arith.constant 0 : index
    %c0_10 = arith.constant 0 : index
    %c0_11 = arith.constant 0 : index
    %25 = vector.load %arg2[%c0_9, %c0_10, %c0_11] : memref<2x4x256xf32, #tpu.memory_space<vmem>>, vector<2x4x256xf32>
    %26 = vector.broadcast %10 : f32 to vector<2x4x256xf32>
    %27 = arith.mulf %26, %25 : vector<2x4x256xf32>
    %28 = arith.addf %24, %27 : vector<2x4x256xf32>
    %c0_12 = arith.constant 0 : index
    %c0_13 = arith.constant 0 : index
    %c0_14 = arith.constant 0 : index
    %29 = vector.load %arg4[%c0_12, %c0_13, %c0_14] : memref<2x4x256xf32, #tpu.memory_space<vmem>>, vector<2x4x256xf32>
    tpu.vector_store %arg4[%c0_12, %c0_13, %c0_14], %28 {strides = array<i32>} : memref<2x4x256xf32, #tpu.memory_space<vmem>>, vector<2x4x256xf32>,
    %c0_15 = arith.constant 0 : index
    %c0_16 = arith.constant 0 : index
    %c0_17 = arith.constant 0 : index
    %30 = vector.load %arg5[%c0_15, %c0_16, %c0_17] : memref<2x4x256xf32, #tpu.memory_space<vmem>>, vector<2x4x256xf32>
    tpu.vector_store %arg5[%c0_15, %c0_16, %c0_17], %19 {strides = array<i32>} : memref<2x4x256xf32, #tpu.memory_space<vmem>>, vector<2x4x256xf32>,
    return
  }
}

module attributes {stable_mosaic.version = 11 : i64} {
  func.func @_standin_model_kernel(%arg0: memref<2x4x256xf32, #tpu.memory_space<vmem>>, %arg1: memref<4x4xf32, #tpu.memory_space<vmem>>, %arg2: memref<4x1xf32, #tpu.memory_space<vmem>>, %arg3: memref<2x4x256xf32, #tpu.memory_space<vmem>>) attributes {dimension_semantics = [], scalar_prefetch = 0 : i64, scratch_operands = 0 : i64, tpu.core_type = #tpu.core_type<tc>} {
    %c0 = arith.constant 0 : index
    %c0_0 = arith.constant 0 : index
    %c0_1 = arith.constant 0 : index
    %0 = vector.load %arg0[%c0, %c0_0, %c0_1] : memref<2x4x256xf32, #tpu.memory_space<vmem>>, vector<2x4x256xf32>
    %cst = arith.constant 2.000000e+00 : f32
    %1 = vector.broadcast %cst : f32 to vector<2x4x256xf32>
    %2 = arith.mulf %1, %0 : vector<2x4x256xf32>
    %cst_2 = arith.constant 1.000000e+00 : f32
    %3 = vector.broadcast %cst_2 : f32 to vector<2x4x256xf32>
    %4 = arith.subf %2, %3 : vector<2x4x256xf32>
    %c0_3 = arith.constant 0 : index
    %c0_4 = arith.constant 0 : index
    %5 = vector.load %arg1[%c0_3, %c0_4] : memref<4x4xf32, #tpu.memory_space<vmem>>, vector<4x4xf32>
    %6 = vector.extract_strided_slice %4 {offsets = [0, 0, 0], sizes = [1, 4, 256], strides = [1, 1, 1]} : vector<2x4x256xf32> to vector<1x4x256xf32>
    %7 = vector.shape_cast %6 : vector<1x4x256xf32> to vector<4x256xf32>
    %cst_5 = arith.constant dense<0.000000e+00> : vector<4x256xf32>
    %8 = tpu.matmul %5, %7, %cst_5 {dimension_numbers = #tpu.dot_dimension_numbers<[1], [0], [0], [1], [0, 0, 1, 1], [], []>} : vector<4x4xf32>, vector<4x256xf32>, vector<4x256xf32> -> vector<4x256xf32>
    %c0_6 = arith.constant 0 : index
    %c0_7 = arith.constant 0 : index
    %9 = vector.load %arg2[%c0_6, %c0_7] : memref<4x1xf32, #tpu.memory_space<vmem>>, vector<4x1xf32>
    %10 = vector.broadcast %9 : vector<4x1xf32> to vector<4x256xf32>
    %11 = arith.addf %8, %10 : vector<4x256xf32>
    %12 = math.tanh %11 : vector<4x256xf32>
    %c0_8 = arith.constant 0 : index
    %c0_9 = arith.constant 0 : index
    %c0_10 = arith.constant 0 : index
    %13 = vector.load %arg3[%c0_8, %c0_9, %c0_10] : memref<2x4x256xf32, #tpu.memory_space<vmem>>, vector<1x4x256xf32>
    %14 = vector.shape_cast %13 : vector<1x4x256xf32> to vector<4x256xf32>
    %15 = vector.shape_cast %12 : vector<4x256xf32> to vector<1x4x256xf32>
    tpu.vector_store %arg3[%c0_8, %c0_9, %c0_10], %15 {strides = array<i32>} : memref<2x4x256xf32, #tpu.memory_space<vmem>>, vector<1x4x256xf32>,
    %c0_11 = arith.constant 0 : index
    %c0_12 = arith.constant 0 : index
    %16 = vector.load %arg1[%c0_11, %c0_12] : memref<4x4xf32, #tpu.memory_space<vmem>>, vector<4x4xf32>
    %17 = vector.extract_strided_slice %4 {offsets = [1, 0, 0], sizes = [1, 4, 256], strides = [1, 1, 1]} : vector<2x4x256xf32> to vector<1x4x256xf32>
    %18 = vector.shape_cast %17 : vector<1x4x256xf32> to vector<4x256xf32>
    %cst_13 = arith.constant dense<0.000000e+00> : vector<4x256xf32>
    %19 = tpu.matmul %16, %18, %cst_13 {dimension_numbers = #tpu.dot_dimension_numbers<[1], [0], [0], [1], [0, 0, 1, 1], [], []>} : vector<4x4xf32>, vector<4x256xf32>, vector<4x256xf32> -> vector<4x256xf32>
    %c0_14 = arith.constant 0 : index
    %c0_15 = arith.constant 0 : index
    %20 = vector.load %arg2[%c0_14, %c0_15] : memref<4x1xf32, #tpu.memory_space<vmem>>, vector<4x1xf32>
    %21 = vector.broadcast %20 : vector<4x1xf32> to vector<4x256xf32>
    %22 = arith.addf %19, %21 : vector<4x256xf32>
    %23 = math.tanh %22 : vector<4x256xf32>
    %c1 = arith.constant 1 : index
    %c0_16 = arith.constant 0 : index
    %c0_17 = arith.constant 0 : index
    %24 = vector.load %arg3[%c1, %c0_16, %c0_17] : memref<2x4x256xf32, #tpu.memory_space<vmem>>, vector<1x4x256xf32>
    %25 = vector.shape_cast %24 : vector<1x4x256xf32> to vector<4x256xf32>
    %26 = vector.shape_cast %23 : vector<4x256xf32> to vector<1x4x256xf32>
    tpu.vector_store %arg3[%c1, %c0_16, %c0_17], %26 {strides = array<i32>} : memref<2x4x256xf32, #tpu.memory_space<vmem>>, vector<1x4x256xf32>,
    return
  }
}

</mosaic_0001>

<llo_original>
// kernel: gaussian_diffusion_forward.3
$region0: #{gaussian_diffusion_forward.3}
  #allocation0 [shape = 'u32[]', space=smem, size = 0x4, offset = 0x4, fixed_abs, tag = 'smem constant byte address 0x4 - core index']
  #allocation1 [shape = 'u32[144,128]{1,0:T(1,128)}', space=vmem, size = 0x12000, scoped, tag = 'internal scratch']
  %s0 = inlined_call_operand.vmem [shape: f32[2,4,256], index: 0, kind: input, shape index: {}]
  %s1 = inlined_call_operand.vmem [shape: f32[2,4,256], index: 1, kind: input, shape index: {}]
  %s2 = inlined_call_operand.vmem [shape: f32[2,4,256], index: 2, kind: input, shape index: {}]
  %s3 = inlined_call_operand.vmem [shape: f32[5], index: 3, kind: input, shape index: {}]
  %s4 = inlined_call_operand.vmem [shape: f32[2,4,256], index: 4, kind: output, shape index: {0}]
  %s5 = inlined_call_operand.vmem [shape: f32[2,4,256], index: 5, kind: output, shape index: {1}]
  %6 = xla_tuple %s4, %s5
  %s7 = sld [smem:[#allocation0]]
  $region38: #{gaussian_diffusion_forward.3} parent=0
    _
  %s9 = ssub.s32 1, %s7
  %s10 = scalar_select 0, %s9, %s7
  $region1: #{gaussian_diffusion_forward.3} parent=0
    #allocation2 [shape = 'u8[512]{0}', space=smem, size = 0x200, scoped, tag = 'input window, operand 3, single buffered']
    #allocation3 [shape = 's32[1]{0}', space=sflag, size = 0x4, scoped, tag = 'scoped memory for gaussian_diffusion_forward.3']
    %11 = vsyncpa [#allocation3], 0
    // Predicated region
    $region2: #{gaussian_diffusion_forward.3} parent=1 // pred_check
      _
    $region3: #{gaussian_diffusion_forward.3} parent=1 // pred_check_branch
      %13 = sbr.rel (0) target = $region5
    $region4: #{gaussian_diffusion_forward.3} parent=1 // pred_region
      _
    $region5: #{gaussian_diffusion_forward.3} parent=1 // pred_fallthru
      _
    // Predicated region
    $region6: #{gaussian_diffusion_forward.3} parent=1 // pred_check
      _
    $region7: #{gaussian_diffusion_forward.3} parent=1 // pred_check_branch
      %15 = sbr.rel (0) target = $region9
    $region8: #{gaussian_diffusion_forward.3} parent=1 // pred_region
      _
    $region9: #{gaussian_diffusion_forward.3} parent=1 // pred_fallthru
      _
    // Predicated region
    $region10: #{gaussian_diffusion_forward.3} parent=1 // pred_check
      _
    $region11: #{gaussian_diffusion_forward.3} parent=1 // pred_check_branch
      %17 = sbr.rel (0) target = $region13
    $region12: #{gaussian_diffusion_forward.3} parent=1 // pred_region
      _
    $region13: #{gaussian_diffusion_forward.3} parent=1 // pred_fallthru
      _
    // Predicated region
    $region14: #{gaussian_diffusion_forward.3} parent=1 // pred_check
      _
    $region15: #{gaussian_diffusion_forward.3} parent=1 // pred_check_branch
      %19 = sbr.rel (0) target = $region17
    $region16: #{gaussian_diffusion_forward.3} parent=1 // pred_region
      %s21 = ssub.s32 16, 16
      %22 = vsyncadd [#allocation3], %s21
      %s24 = sshll.u32 %s3, 4
      %s25 = int_to_ptr.vmem [resolvable:$true] %s24
      %27 = dma.vmem_to_smem %s25, 16, [#allocation2], [#allocation3]
    $region17: #{gaussian_diffusion_forward.3} parent=1 // pred_fallthru
      _
    // Predicated region
    $region18: #{gaussian_diffusion_forward.3} parent=1 // pred_check
      _
    $region19: #{gaussian_diffusion_forward.3} parent=1 // pred_check_branch
      %29 = sbr.rel (0) target = $region21
    $region20: #{gaussian_diffusion_forward.3} parent=1 // pred_region
      %30 = dma.done [#allocation3], 16
    $region21: #{gaussian_diffusion_forward.3} parent=1 // pred_fallthru
      _
    %31 = sfence
    %v32 = vld [vmem:[%s0] sm:$0xff]
    %v33 = vld [vmem:[%s0 + $0x8] sm:$0xff]
    %v34 = vmul.f32 %v32, 2.0
    %v35 = vmul.f32 %v33, 2.0
    %v36 = vsub.f32 %v34, 1.0
    %v37 = vsub.f32 %v35, 1.0
    %v38 = vld [vmem:[%s1] sm:$0xff]
    %v39 = vld [vmem:[%s1 + $0x8] sm:$0xff]
    %s40 = sld [smem:[#allocation2]]
    %s41 = sld [smem:[#allocation2 + $0x1]]
    %s42 = sld [smem:[#allocation2 + $0x2]]
    %s43 = sld [smem:[#allocation2 + $0x3]]
    %s44 = sld [smem:[#allocation2 + $0x4]]
    %v45 = vstv %s40
    %v46 = vmul.f32 %v45, %v36
    %v47 = vmul.f32 %v45, %v37
    %v48 = vstv %s41
    %v49 = vmul.f32 %v48, %v38
    %v50 = vmul.f32 %v48, %v39
    %v51 = vsub.f32 %v46, %v49
    %v52 = vsub.f32 %v47, %v50
    %v53 = vmax.f32 %v51, -1.0
    %v54 = vmax.f32 %v52, -1.0
    %v55 = vmin.f32 %v53, 1.0
    %v56 = vmin.f32 %v54, 1.0
    %v57 = vstv %s42
    %v58 = vmul.f32 %v57, %v55
    %v59 = vmul.f32 %v57, %v56
    %v60 = vstv %s43
    %v61 = vmul.f32 %v60, %v36
    %v62 = vmul.f32 %v60, %v37
    %v63 = vadd.f32 %v58, %v61
    %v64 = vadd.f32 %v59, %v62
    %v65 = vld [vmem:[%s2] sm:$0xff]
    %v66 = vld [vmem:[%s2 + $0x8] sm:$0xff]
    %v67 = vstv %s44
    %v68 = vmul.f32 %v67, %v65
    %v69 = vmul.f32 %v67, %v66
    %v70 = vadd.f32 %v63, %v68
    %v71 = vadd.f32 %v64, %v69
    %72 = vst [vmem:[%s4] sm:$0xff] %v70
    %73 = vst [vmem:[%s4 + $0x8] sm:$0xff] %v71
    %74 = vst [vmem:[%s5] sm:$0xff] %v55
    %75 = vst [vmem:[%s5 + $0x8] sm:$0xff] %v56
    // Predicated region
    $region22: #{gaussian_diffusion_forward.3} parent=1 // pred_check
      _
    $region23: #{gaussian_diffusion_forward.3} parent=1 // pred_check_branch
      %77 = sbr.rel (0) target = $region25
    $region24: #{gaussian_diffusion_forward.3} parent=1 // pred_region
      _
    $region25: #{gaussian_diffusion_forward.3} parent=1 // pred_fallthru
      _
    // Predicated region
    $region26: #{gaussian_diffusion_forward.3} parent=1 // pred_check
      _
    $region27: #{gaussian_diffusion_forward.3} parent=1 // pred_check_branch
      %79 = sbr.rel (0) target = $region29
    $region28: #{gaussian_diffusion_forward.3} parent=1 // pred_region
      _
    $region29: #{gaussian_diffusion_forward.3} parent=1 // pred_fallthru
      _
    // Predicated region
    $region30: #{gaussian_diffusion_forward.3} parent=1 // pred_check
      _
    $region31: #{gaussian_diffusion_forward.3} parent=1 // pred_check_branch
      %81 = sbr.rel (0) target = $region33
    $region32: #{gaussian_diffusion_forward.3} parent=1 // pred_region
      _
    $region33: #{gaussian_diffusion_forward.3} parent=1 // pred_fallthru
      _
    // Predicated region
    $region34: #{gaussian_diffusion_forward.3} parent=1 // pred_check
      _
    $region35: #{gaussian_diffusion_forward.3} parent=1 // pred_check_branch
      %83 = sbr.rel (0) target = $region37
    $region36: #{gaussian_diffusion_forward.3} parent=1 // pred_region
      _
    $region37: #{gaussian_diffusion_forward.3} parent=1 // pred_fallthru
      _
    %84 = vsyncpa [#allocation3], 1

// kernel: gaussian_diffusion_forward.2
$region0: #{gaussian_diffusion_forward.2}
  #allocation0 [shape = 'u32[]', space=smem, size = 0x4, offset = 0x4, fixed_abs, tag = 'smem constant byte address 0x4 - core index']
  #allocation1 [shape = 'u32[144,128]{1,0:T(1,128)}', space=vmem, size = 0x12000, scoped, tag = 'internal scratch']
  %s0 = inlined_call_operand.vmem [shape: f32[2,4,256], index: 0, kind: input, shape index: {}]
  %s1 = inlined_call_operand.vmem [shape: f32[4,4], index: 1, kind: input, shape index: {}]
  %s2 = inlined_call_operand.vmem [shape: f32[4,1], index: 2, kind: input, shape index: {}]
  %s3 = inlined_call_operand.vmem [shape: f32[2,4,256], index: 3, kind: output, shape index: {}]
  %s4 = sld [smem:[#allocation0]]
  $region22: #{gaussian_diffusion_forward.2} parent=0
    _
  %s6 = ssub.s32 1, %s4
  %s7 = scalar_select 0, %s6, %s4
  // Predicated region
  $region2: #{gaussian_diffusion_forward.2} parent=0 // pred_check
    _
  $region3: #{gaussian_diffusion_forward.2} parent=0 // pred_check_branch
    %9 = sbr.rel (0) target = $region5
  $region4: #{gaussian_diffusion_forward.2} parent=0 // pred_region
    _
  $region5: #{gaussian_diffusion_forward.2} parent=0 // pred_fallthru
    _
  // Predicated region
  $region6: #{gaussian_diffusion_forward.2} parent=0 // pred_check
    _
  $region7: #{gaussian_diffusion_forward.2} parent=0 // pred_check_branch
    %11 = sbr.rel (0) target = $region9
  $region8: #{gaussian_diffusion_forward.2} parent=0 // pred_region
    _
  $region9: #{gaussian_diffusion_forward.2} parent=0 // pred_fallthru
    _
  // Predicated region
  $region10: #{gaussian_diffusion_forward.2} parent=0 // pred_check
    _
  $region11: #{gaussian_diffusion_forward.2} parent=0 // pred_check_branch
    %13 = sbr.rel (0) target = $region13
  $region12: #{gaussian_diffusion_forward.2} parent=0 // pred_region
    _
  $region13: #{gaussian_diffusion_forward.2} parent=0 // pred_fallthru
    _
  %v14 = vld [vmem:[%s0] sm:$0xff]
  %v15 = vld [vmem:[%s0 + $0x8] sm:$0xff]
  %v16 = vmul.f32 %v14, 2.0
  %v17 = vmul.f32 %v15, 2.0
  %v18 = vsub.f32 %v16, 1.0
  %v19 = vsub.f32 %v17, 1.0
  %v20 = vld [vmem:[%s1] sm:$0xf]
  %v21 = vld [vmem:[%s2] sm:$0xf]
  %23 = vset.pattern.permute.xlu0 0
  %24 = vperm.xlu0 %23, %v21
  %v25 = vpop.permute.xlu0 %24
  %v28 = vcombine.high %v18, %v18
  %vm29 = vcmask 31744
  %v31 = vsel %vm29, %v20, 0
  %vm33 = vcmask 1043456
  %v34 = vsel %vm33, %v18, 0
  %v36 = vsel %vm33, %v28, 0
  %38 = vmatprep.subr.mxu0 0.0
  %39 = vmatpush1.msra.mxu0 0.0
  %40 = vmatprep.subr.mxu0 0.0
  %41 = vmatpush1.msra.mxu0 0.0
  %42 = vmatprep.subr.mxu0 0.0
  %43 = vmatpush1.msra.mxu0 0.0
  %44 = vmatprep.subr.mxu0 0.0
  %45 = vmatpush1.msra.mxu0 0.0
  %46 = vmatprep.subr.mxu0 0.0
  %47 = vmatpush1.msra.mxu0 0.0
  %48 = vmatprep.subr.mxu0 0.0
  %49 = vmatpush1.msra.mxu0 0.0
  %50 = vmatprep.subr.mxu0 0.0
  %51 = vmatpush1.msra.mxu0 0.0
  %52 = vmatprep.subr.mxu0 0.0
  %53 = vmatpush1.msra.mxu0 0.0
  %54 = vmatprep.subr.mxu0 0.0
  %55 = vmatpush1.msra.mxu0 0.0
  %56 = vmatprep.subr.mxu0 0.0
  %57 = vmatpush1.msra.mxu0 0.0
  %58 = vmatprep.subr.mxu0 0.0
  %59 = vmatpush1.msra.mxu0 0.0
  %60 = vmatprep.subr.mxu0 0.0
  %61 = vmatpush1.msra.mxu0 0.0
  %62 = vmatprep.subr.mxu0 0.0
  %63 = vmatpush1.msra.mxu0 0.0
  %64 = vmatprep.subr.mxu0 0.0
  %65 = vmatpush1.msra.mxu0 0.0
  %66 = vmatprep.subr.mxu0 0.0
  %67 = vmatpush1.msra.mxu0 0.0
  %68 = vmatprep.subr.mxu0 %v36
  %69 = vmatpush1.msra.mxu0 %v34
  %70 = vmatprep.subr.mxu0 0.0
  %71 = vmatpush2.msra.mxu0 0.0
  %72 = vmatprep.subr.mxu0 0.0
  %73 = vmatpush2.msra.mxu0 0.0
  %74 = vmatprep.subr.mxu0 0.0
  %75 = vmatpush2.msra.mxu0 0.0
  %76 = vmatprep.subr.mxu0 0.0
  %77 = vmatpush2.msra.mxu0 0.0
  %78 = vmatprep.subr.mxu0 0.0
  %79 = vmatpush2.msra.mxu0 0.0
  %80 = vmatprep.subr.mxu0 0.0
  %81 = vmatpush2.msra.mxu0 0.0
  %82 = vmatprep.subr.mxu0 0.0
  %83 = vmatpush2.msra.mxu0 0.0
  %84 = vmatprep.subr.mxu0 0.0
  %85 = vmatpush2.msra.mxu0 0.0
  %86 = vmatprep.subr.mxu0 0.0
  %87 = vmatpush2.msra.mxu0 0.0
  %88 = vmatprep.subr.mxu0 0.0
  %89 = vmatpush2.msra.mxu0 0.0
  %90 = vmatprep.subr.mxu0 0.0
  %91 = vmatpush2.msra.mxu0 0.0
  %92 = vmatprep.subr.mxu0 0.0
  %93 = vmatpush2.msra.mxu0 0.0
  %94 = vmatprep.subr.mxu0 0.0
  %95 = vmatpush2.msra.mxu0 0.0
  %96 = vmatprep.subr.mxu0 0.0
  %97 = vmatpush2.msra.mxu0 0.0
  %98 = vmatprep.subr.mxu0 0.0
  %99 = vmatpush2.msra.mxu0 0.0
  %100 = vmatprep.subr.mxu0 0.0
  %101 = vmatpush2.msra.mxu0 0.0
  %102 = vmatprep.mubr.f32.mxu0 0.0
  %103 = vmatmul.mubr.f32.gmra.mxu0 %v31
  %v104 = vpop.f32.mrf.mxu0
  %v105 = vadd.f32 %v25, %v104
  %v106 = vpop.f32.mrf.mxu0
  %v107 = vadd.f32 %v25, %v106
  %108 = vdwg.mxu0
  %v109 = vtanh.pop %v105
  %v110 = vtanh.pop %v107
  %v113 = vcombine.low %v109, %v110
  %115 = vst [vmem:[%s3] sm:$0xff] %v113
  %v116 = vld [vmem:[%s1] sm:$0xf]
  %v117 = vld [vmem:[%s2] sm:$0xf]
  %119 = vset.pattern.permute.xlu0 0
  %120 = vperm.xlu0 %119, %v117
  %v121 = vpop.permute.xlu0 %120
  %v124 = vcombine.high %v19, %v19
  %v126 = vsel %vm29, %v116, 0
  %v128 = vsel %vm33, %v19, 0
  %v130 = vsel %vm33, %v124, 0
  %132 = vmatprep.subr.mxu0 0.0
  %133 = vmatpush1.msra.mxu0 0.0
  %134 = vmatprep.subr.mxu0 0.0
  %135 = vmatpush1.msra.mxu0 0.0
  %136 = vmatprep.subr.mxu0 0.0
  %137 = vmatpush1.msra.mxu0 0.0
  %138 = vmatprep.subr.mxu0 0.0
  %139 = vmatpush1.msra.mxu0 0.0
  %140 = vmatprep.subr.mxu0 0.0
  %141 = vmatpush1.msra.mxu0 0.0
  %142 = vmatprep.subr.mxu0 0.0
  %143 = vmatpush1.msra.mxu0 0.0
  %144 = vmatprep.subr.mxu0 0.0
  %145 = vmatpush1.msra.mxu0 0.0
  %146 = vmatprep.subr.mxu0 0.0
  %147 = vmatpush1.msra.mxu0 0.0
  %148 = vmatprep.subr.mxu0 0.0
  %149 = vmatpush1.msra.mxu0 0.0
  %150 = vmatprep.subr.mxu0 0.0
  %151 = vmatpush1.msra.mxu0 0.0
  %152 = vmatprep.subr.mxu0 0.0
  %153 = vmatpush1.msra.mxu0 0.0
  %154 = vmatprep.subr.mxu0 0.0
  %155 = vmatpush1.msra.mxu0 0.0
  %156 = vmatprep.subr.mxu0 0.0
  %157 = vmatpush1.msra.mxu0 0.0
  %158 = vmatprep.subr.mxu0 0.0
  %159 = vmatpush1.msra.mxu0 0.0
  %160 = vmatprep.subr.mxu0 0.0
  %161 = vmatpush1.msra.mxu0 0.0
  %162 = vmatprep.subr.mxu0 %v130
  %163 = vmatpush1.msra.mxu0 %v128
  %164 = vmatprep.subr.mxu0 0.0
  %165 = vmatpush2.msra.mxu0 0.0
  %166 = vmatprep.subr.mxu0 0.0
  %167 = vmatpush2.msra.mxu0 0.0
  %168 = vmatprep.subr.mxu0 0.0
  %169 = vmatpush2.msra.mxu0 0.0
  %170 = vmatprep.subr.mxu0 0.0
  %171 = vmatpush2.msra.mxu0 0.0
  %172 = vmatprep.subr.mxu0 0.0
  %173 = vmatpush2.msra.mxu0 0.0
  %174 = vmatprep.subr.mxu0 0.0
  %175 = vmatpush2.msra.mxu0 0.0
  %176 = vmatprep.subr.mxu0 0.0
  %177 = vmatpush2.msra.mxu0 0.0
  %178 = vmatprep.subr.mxu0 0.0
  %179 = vmatpush2.msra.mxu0 0.0
  %180 = vmatprep.subr.mxu0 0.0
  %181 = vmatpush2.msra.mxu0 0.0
  %182 = vmatprep.subr.mxu0 0.0
  %183 = vmatpush2.msra.mxu0 0.0
  %184 = vmatprep.subr.mxu0 0.0
  %185 = vmatpush2.msra.mxu0 0.0
  %186 = vmatprep.subr.mxu0 0.0
  %187 = vmatpush2.msra.mxu0 0.0
  %188 = vmatprep.subr.mxu0 0.0
  %189 = vmatpush2.msra.mxu0 0.0
  %190 = vmatprep.subr.mxu0 0.0
  %191 = vmatpush2.msra.mxu0 0.0
  %192 = vmatprep.subr.mxu0 0.0
  %193 = vmatpush2.msra.mxu0 0.0
  %194 = vmatprep.subr.mxu0 0.0
  %195 = vmatpush2.msra.mxu0 0.0
  %196 = vmatprep.mubr.f32.mxu0 0.0
  %197 = vmatmul.mubr.f32.gmra.mxu0 %v126
  %v198 = vpop.f32.mrf.mxu0
  %v199 = vadd.f32 %v121, %v198
  %v200 = vpop.f32.mrf.mxu0
  %v201 = vadd.f32 %v121, %v200
  %202 = vdwg.mxu0
  %v203 = vtanh.pop %v199
  %v204 = vtanh.pop %v201
  %v207 = vcombine.low %v203, %v204
  %s209 = scalar_lea.vmem %s3, 8
  %210 = vst [vmem:[%s209] sm:$0xff] %v207
  // Predicated region
  $region14: #{gaussian_diffusion_forward.2} parent=0 // pred_check
    _
  $region15: #{gaussian_diffusion_forward.2} parent=0 // pred_check_branch
    %212 = sbr.rel (0) target = $region17
  $region16: #{gaussian_diffusion_forward.2} parent=0 // pred_region
    _
  $region17: #{gaussian_diffusion_forward.2} parent=0 // pred_fallthru
    _
  // Predicated region
  $region18: #{gaussian_diffusion_forward.2} parent=0 // pred_check
    _
  $region19: #{gaussian_diffusion_forward.2} parent=0 // pred_check_branch
    %214 = sbr.rel (0) target = $region21
  $region20: #{gaussian_diffusion_forward.2} parent=0 // pred_region
    _
  $region21: #{gaussian_diffusion_forward.2} parent=0 // pred_fallthru
    _

</llo_original>
